<compile_context>
chip_gen: v7x
topology: tpu7x:2x2x1
jax: 0.10.0
libtpu: 0.0.40
codegen_flags: <defaults>
</compile_context>

<pallas_src>
import functools

import jax
import jax.numpy as jnp
from jax.experimental import pallas as pl
from jax.experimental.pallas import tpu as pltpu

IGNORE_LABEL = 255       # cfg.DATASET.IGNORE_LABEL
UPPER_BOUND = 1.0
NORM = False
# cfg.BATCH_WEIGHTING is irrelevant for the numerical result (see note above).


# ---------------------------------------------------------------------------
# Fused kernel: per-image, per-class NLL partial sums + class counts
# ---------------------------------------------------------------------------
def _fused_loss_kernel(x_ref, t_ref, s_ref, cnt_ref, top_ref, *,
                       num_classes, hw, tile, kb, ragged):
    j = pl.program_id(1)          # pixel-split index (megacore balance axis)
    k = pl.program_id(2)          # pixel-block index within the split (reduction)

    @pl.when(k == 0)
    def _():
        s_ref[...] = jnp.zeros_like(s_ref)
        cnt_ref[...] = jnp.zeros_like(cnt_ref)
        top_ref[...] = jnp.zeros_like(top_ref)

    x = x_ref[0].astype(jnp.float32)                # (C, T)  widen bf16 in-kernel
    t = t_ref[0].astype(jnp.int32)                  # (1, T)  uint8 over HBM

    # log-sum-exp over the class axis; log_softmax is never materialized.
    # TODO(synk): on v7x-bf16 the max / (x - m) step could run in bf16 VALU (2x rate)
    # before widening for exp; kept in f32 here for accuracy.
    m = jnp.max(x, axis=0, keepdims=True)                                   # (1, T)
    lse = m + jnp.log(jnp.sum(jnp.exp(x - m), axis=0, keepdims=True))       # (1, T)
    d = lse - x                                     # (C, T) = -log_softmax, computed once

    classes = jax.lax.broadcasted_iota(jnp.int32, (num_classes, 1), 0)      # (C, 1)
    sel = t == classes                              # (C, T) bool; ignore labels match no row
    topm = t == num_classes                         # (1, T) histc max-inclusive last bin
    if ragged:
        # Mask lanes past the true pixel count (OOB tail of the last block holds
        # garbage; jnp.where is a select so NaN/Inf garbage cannot leak through).
        pos = (j * kb + k) * tile + jax.lax.broadcasted_iota(jnp.int32, (1, tile), 1)
        valid = pos < hw
        sel = jnp.logical_and(sel, valid)
        topm = jnp.logical_and(topm, valid)

    s_ref[0] += jnp.sum(jnp.where(sel, d, 0.0), axis=1, keepdims=True)      # (C, 1)
    cnt_ref[0] += jnp.sum(jnp.where(sel, 1.0, 0.0), axis=1, keepdims=True)  # (C, 1)
    top_ref[0] += jnp.sum(jnp.where(topm, 1.0, 0.0), axis=1, keepdims=True) # (1, 1)


def _choose_tiling(hw, num_classes, batch, hw_splits=None,
                   tile_bytes=6 * 1024 * 1024):
    """Pick (splits, T, kb) with T a multiple of 128, T <= hw, kb*splits*T >= hw,
    and every grid block containing at least one valid pixel (no OOB blocks)."""
    # ~6 MiB f32-equivalent (C, T) strip: DMA long enough to hide the ~0.35 us
    # per-grid-step overhead on every generation, small enough that the
    # double-buffered working set fits comfortably below v7x's 64 MiB/TC.
    max_t = max(128, (tile_bytes // (4 * num_classes)) // 128 * 128)
    max_t = min(max_t, (hw // 128) * 128)           # never exceed the pixel axis
    if hw_splits is None:
        # v7x megacore balance: split the pixel axis when the image count is odd
        # (incl. N == 1). On 1-TC chips the extra axis is just grid bookkeeping.
        splits = 2 if batch % 2 == 1 else 1
    else:
        splits = max(1, int(hw_splits))
    while True:
        t = max_t
        while t >= 128:
            kb_total = -(-hw // t)                  # cdiv
            if kb_total % splits == 0:
                return splits, t, kb_total // splits
            t -= 128
        if splits == 1:
            raise ValueError("could not find a lane-aligned pixel tiling")
        splits = 1                                  # fall back: no megacore pixel split


def image_based_ce_loss(inputs, targets, *, num_classes,
                        ignore_label=IGNORE_LABEL, norm=NORM,
                        upper_bound=UPPER_BOUND, hw_splits=None,
                        tile_bytes=6 * 1024 * 1024):
    """inputs: (N, C, H, W) logits (f32 or bf16); targets: (N, H, W) int labels."""
    N, C, H, W = inputs.shape
    if C != num_classes:
        raise ValueError("channel dim must equal num_classes")
    if ignore_label < num_classes:
        # TODO(synk): nonstandard config (ignore label inside the histc range)
        # would need separate histogram vs NLL counts; default cfg uses 255.
        raise NotImplementedError("ignore_label must be >= num_classes")

    HW = H * W
    x = inputs.reshape(N, C, HW)                         # native dtype (bf16 ok)
    t = targets.reshape(N, 1, HW).astype(jnp.uint8)      # 1 B/pixel over HBM

    # Tiny images only: pad the pixel axis up to one full lane tile (128).
    hw_pad = HW
    if HW < 128:
        pad = 128 - HW
        x = jnp.pad(x, ((0, 0), (0, 0), (0, pad)))
        t = jnp.pad(t, ((0, 0), (0, 0), (0, pad)), constant_values=ignore_label)
        hw_pad = 128

    splits, T, kb = _choose_tiling(hw_pad, num_classes, N, hw_splits, tile_bytes)
    ragged = (splits * kb * T != HW)

    in_tile_bytes = num_classes * T * jnp.dtype(x.dtype).itemsize
    tgt_tile_bytes = T                                     # uint8
    vmem_limit = int(min(48 * 1024 * 1024,
                         max(16 * 1024 * 1024,
                             2 * in_tile_bytes + 2 * tgt_tile_bytes
                             + 8 * 1024 * 1024)))

    kern = functools.partial(_fused_loss_kernel, num_classes=num_classes,
                             hw=HW, tile=T, kb=kb, ragged=ragged)
    S_out, cnt_out, top_out = pl.pallas_call(
        kern,
        out_shape=(
            jax.ShapeDtypeStruct((N * splits, C, 1), jnp.float32),
            jax.ShapeDtypeStruct((N * splits, C, 1), jnp.float32),
            jax.ShapeDtypeStruct((N * splits, 1, 1), jnp.float32),
        ),
        grid=(N, splits, kb),
        in_specs=[
            pl.BlockSpec((1, C, T), lambda i, j, k: (i, 0, j * kb + k)),
            pl.BlockSpec((1, 1, T), lambda i, j, k: (i, 0, j * kb + k)),
        ],
        out_specs=(
            pl.BlockSpec((1, C, 1), lambda i, j, k: (i * splits + j, 0, 0)),
            pl.BlockSpec((1, C, 1), lambda i, j, k: (i * splits + j, 0, 0)),
            pl.BlockSpec((1, 1, 1), lambda i, j, k: (i * splits + j, 0, 0)),
        ),
        compiler_params=pltpu.CompilerParams(
            dimension_semantics=("parallel", "parallel", "arbitrary"),
            vmem_limit_bytes=vmem_limit),
    )(x, t)

    # ---- tiny glue (mirrors the PyTorch forward) --------------------------------
    S = jnp.sum(S_out[:, :, 0].reshape(N, splits, C), axis=1)       # (N, C)
    cnt = jnp.sum(cnt_out[:, :, 0].reshape(N, splits, C), axis=1)   # (N, C)
    top = jnp.sum(top_out)                                          # scalar

    bins = jnp.sum(cnt, axis=0)
    bins = bins.at[num_classes - 1].add(top)        # histc: max value is inclusive
    hist_norm = bins / jnp.sum(bins)
    nonzero = (bins != 0).astype(jnp.float32)
    if norm:
        w = nonzero * upper_bound * (1.0 / hist_norm) + 1.0
    else:
        w = nonzero * upper_bound * (1.0 - hist_norm) + 1.0

    num = S @ w                                     # (N,) weighted NLL numerators
    den = cnt @ w                                   # (N,) weighted pixel counts
    # NOTE: an image that is entirely ignore_label gives den == 0 -> NaN,
    # the same hazard as nn.NLLLoss(reduction='mean') in the reference module.
    return jnp.sum(num / den)


# ---------------------------------------------------------------------------
# Pure-JAX reference (mirrors the PyTorch forward) for validation
# ---------------------------------------------------------------------------
def ref_image_based_ce_loss(inputs, targets, num_classes,
                            ignore_label=IGNORE_LABEL, norm=NORM,
                            upper_bound=UPPER_BOUND):
    bins = jnp.stack([jnp.sum((targets == c).astype(jnp.float32))
                      for c in range(num_classes)])
    bins = bins.at[num_classes - 1].add(
        jnp.sum((targets == num_classes).astype(jnp.float32)))
    hist_norm = bins / jnp.sum(bins)
    nonzero = (bins != 0).astype(jnp.float32)
    if norm:
        w = nonzero * upper_bound * (1.0 / hist_norm) + 1.0
    else:
        w = nonzero * upper_bound * (1.0 - hist_norm) + 1.0

    N, C, H, W = inputs.shape
    loss = 0.0
    for i in range(N):
        logp = jax.nn.log_softmax(inputs[i].astype(jnp.float32), axis=0)
        logp = logp.reshape(C, H * W)
        ti = targets[i].reshape(H * W)
        valid = (ti >= 0) & (ti < num_classes)
        tc = jnp.where(valid, ti, 0)
        picked = logp[tc, jnp.arange(H * W)]
        wpix = w[tc] * valid.astype(jnp.float32)
        loss += jnp.sum(wpix * (-picked)) / jnp.sum(wpix)
    return loss


if __name__ == "__main__":
    key = jax.random.PRNGKey(0)
    k1, k2, k3, k4, k5, k6 = jax.random.split(key, 6)

    # ---- main test: N=2, C=4, 16x16, f32, ignore labels present -----------------
    N, C, H, W = 2, 4, 16, 16
    inputs = jax.random.normal(k1, (N, C, H, W), dtype=jnp.float32)
    raw = jax.random.randint(k2, (N, H, W), 0, C + 1)
    targets = jnp.where(raw == C, IGNORE_LABEL, raw).astype(jnp.int32)

    loss = jax.block_until_ready(image_based_ce_loss(inputs, targets, num_classes=C))
    ref = ref_image_based_ce_loss(inputs, targets, C)
    assert jnp.allclose(loss, ref, rtol=1e-5, atol=1e-5), (loss, ref)

    # ---- explicit pixel-split (megacore helper) path ----------------------------
    loss_split = jax.block_until_ready(
        image_based_ce_loss(inputs, targets, num_classes=C, hw_splits=2))
    assert jnp.allclose(loss_split, ref, rtol=1e-5, atol=1e-5), (loss_split, ref)

    # ---- bf16 logits shipped over HBM, widened to f32 inside the kernel ---------
    inputs_bf16 = inputs.astype(jnp.bfloat16)
    loss_bf16 = jax.block_until_ready(
        image_based_ce_loss(inputs_bf16, targets, num_classes=C))
    ref_bf16 = ref_image_based_ce_loss(inputs_bf16.astype(jnp.float32), targets, C)
    assert jnp.allclose(loss_bf16, ref_bf16, rtol=1e-4, atol=1e-4), (loss_bf16, ref_bf16)

    # ---- ragged pixel count + odd batch (auto megacore split + last-tile mask) --
    N2, C2, H2, W2 = 3, 5, 12, 12          # HW=144, not a multiple of 128
    inputs2 = jax.random.normal(k3, (N2, C2, H2, W2), dtype=jnp.float32)
    raw2 = jax.random.randint(k4, (N2, H2, W2), 0, C2 + 2)
    targets2 = jnp.where(raw2 == C2 + 1, IGNORE_LABEL, raw2).astype(jnp.int32)
    loss2 = jax.block_until_ready(
        image_based_ce_loss(inputs2, targets2, num_classes=C2))
    ref2 = ref_image_based_ce_loss(inputs2, targets2, C2)
    assert jnp.allclose(loss2, ref2, rtol=1e-5, atol=1e-5), (loss2, ref2)

    # ---- tiny image (HW < 128 -> padded pixel axis) ------------------------------
    N3, C3, H3, W3 = 2, 3, 8, 8
    inputs3 = jax.random.normal(k5, (N3, C3, H3, W3), dtype=jnp.float32)
    raw3 = jax.random.randint(k6, (N3, H3, W3), 0, C3 + 1)
    targets3 = jnp.where(raw3 == C3, IGNORE_LABEL, raw3).astype(jnp.int32)
    loss3 = jax.block_until_ready(
        image_based_ce_loss(inputs3, targets3, num_classes=C3))
    ref3 = ref_image_based_ce_loss(inputs3, targets3, C3)
    assert jnp.allclose(loss3, ref3, rtol=1e-5, atol=1e-5), (loss3, ref3)

    print("KERNEL_OK")
</pallas_src>

<mosaic_0001>
module attributes {stable_mosaic.version = 11 : i64} {
  func.func @_fused_loss_kernel(%arg0: i32, %arg1: i32, %arg2: i32, %arg3: memref<1x4x256xf32, #tpu.memory_space<vmem>>, %arg4: memref<1x1x256xi8, #tpu.memory_space<vmem>>, %arg5: memref<1x4x1xf32, #tpu.memory_space<vmem>>, %arg6: memref<1x4x1xf32, #tpu.memory_space<vmem>>, %arg7: memref<1x1x1xf32, #tpu.memory_space<vmem>>) attributes {dimension_semantics = [#tpu.dimension_semantics<parallel>, #tpu.dimension_semantics<parallel>, #tpu.dimension_semantics<arbitrary>], iteration_bounds = array<i64: 2, 1, 1>, scalar_prefetch = 0 : i64, scratch_operands = 0 : i64, tpu.core_type = #tpu.core_type<tc>, window_params = [{transform_indices = @transform_0, window_bounds = array<i64: 1, 4, 256>}, {transform_indices = @transform_1, window_bounds = array<i64: 1, 1, 256>}, {transform_indices = @transform_2, window_bounds = array<i64: 1, 4, 1>}, {transform_indices = @transform_3, window_bounds = array<i64: 1, 4, 1>}, {transform_indices = @transform_4, window_bounds = array<i64: 1, 1, 1>}]} {
    %c0_i32 = arith.constant 0 : i32
    %0 = arith.cmpi eq, %arg2, %c0_i32 : i32
    %1 = arith.extui %0 : i1 to i32
    %c0_i32_0 = arith.constant 0 : i32
    %2 = arith.cmpi ne, %1, %c0_i32_0 : i32
    scf.if %2 {
      %cst_33 = arith.constant 0.000000e+00 : f32
      %57 = vector.broadcast %cst_33 : f32 to vector<1x4x1xf32>
      %c0_34 = arith.constant 0 : index
      %c0_35 = arith.constant 0 : index
      %c0_36 = arith.constant 0 : index
      %58 = vector.load %arg5[%c0_34, %c0_35, %c0_36] : memref<1x4x1xf32, #tpu.memory_space<vmem>>, vector<1x4x1xf32>
      tpu.vector_store %arg5[%c0_34, %c0_35, %c0_36], %57 {strides = array<i32>} : memref<1x4x1xf32, #tpu.memory_space<vmem>>, vector<1x4x1xf32>,
      %cst_37 = arith.constant 0.000000e+00 : f32
      %59 = vector.broadcast %cst_37 : f32 to vector<1x4x1xf32>
      %c0_38 = arith.constant 0 : index
      %c0_39 = arith.constant 0 : index
      %c0_40 = arith.constant 0 : index
      %60 = vector.load %arg6[%c0_38, %c0_39, %c0_40] : memref<1x4x1xf32, #tpu.memory_space<vmem>>, vector<1x4x1xf32>
      tpu.vector_store %arg6[%c0_38, %c0_39, %c0_40], %59 {strides = array<i32>} : memref<1x4x1xf32, #tpu.memory_space<vmem>>, vector<1x4x1xf32>,
      %cst_41 = arith.constant 0.000000e+00 : f32
      %61 = vector.broadcast %cst_41 : f32 to vector<1x1x1xf32>
      %c0_42 = arith.constant 0 : index
      %c0_43 = arith.constant 0 : index
      %c0_44 = arith.constant 0 : index
      %62 = vector.load %arg7[%c0_42, %c0_43, %c0_44] : memref<1x1x1xf32, #tpu.memory_space<vmem>>, vector<1x1x1xf32>
      tpu.vector_store %arg7[%c0_42, %c0_43, %c0_44], %61 {strides = array<i32>} : memref<1x1x1xf32, #tpu.memory_space<vmem>>, vector<1x1x1xf32>,
    } else {
    }
    %c0 = arith.constant 0 : index
    %c0_1 = arith.constant 0 : index
    %c0_2 = arith.constant 0 : index
    %3 = vector.load %arg3[%c0, %c0_1, %c0_2] : memref<1x4x256xf32, #tpu.memory_space<vmem>>, vector<1x4x256xf32>
    %4 = vector.shape_cast %3 : vector<1x4x256xf32> to vector<4x256xf32>
    %c0_3 = arith.constant 0 : index
    %c0_4 = arith.constant 0 : index
    %c0_5 = arith.constant 0 : index
    %5 = vector.load %arg4[%c0_3, %c0_4, %c0_5] : memref<1x1x256xi8, #tpu.memory_space<vmem>>, vector<1x1x256xi8>
    %6 = vector.shape_cast %5 : vector<1x1x256xi8> to vector<1x256xi8>
    %7 = arith.extui %6 : vector<1x256xi8> to vector<1x256xi32>
    %cst = arith.constant dense<0xFF800000> : vector<256xf32>
    %8 = vector.multi_reduction <maximumf>, %4, %cst [0] : vector<4x256xf32> to vector<256xf32>
    %9 = vector.shape_cast %8 : vector<256xf32> to vector<1x256xf32>
    %10 = vector.broadcast %9 : vector<1x256xf32> to vector<4x256xf32>
    %11 = arith.subf %4, %10 : vector<4x256xf32>
    %12 = math.exp %11 : vector<4x256xf32>
    %cst_6 = arith.constant dense<0.000000e+00> : vector<256xf32>
    %13 = vector.multi_reduction <add>, %12, %cst_6 [0] : vector<4x256xf32> to vector<256xf32>
    %14 = vector.shape_cast %13 : vector<256xf32> to vector<1x256xf32>
    %15 = math.log %14 : vector<1x256xf32>
    %16 = arith.addf %9, %15 : vector<1x256xf32>
    %17 = vector.broadcast %16 : vector<1x256xf32> to vector<4x256xf32>
    %18 = arith.subf %17, %4 : vector<4x256xf32>
    %19 = tpu.iota {dimensions = array<i32: 0>} : vector<4x1xi32>
    %20 = vector.broadcast %7 : vector<1x256xi32> to vector<4x256xi32>
    %21 = vector.broadcast %19 : vector<4x1xi32> to vector<4x256xi32>
    %22 = arith.cmpi eq, %20, %21 : vector<4x256xi32>
    %c4_i32 = arith.constant 4 : i32
    %23 = vector.broadcast %c4_i32 : i32 to vector<1x256xi32>
    %24 = arith.cmpi eq, %7, %23 : vector<1x256xi32>
    %c0_7 = arith.constant 0 : index
    %c0_8 = arith.constant 0 : index
    %c0_9 = arith.constant 0 : index
    %25 = vector.load %arg5[%c0_7, %c0_8, %c0_9] : memref<1x4x1xf32, #tpu.memory_space<vmem>>, vector<1x4x1xf32>
    %26 = vector.shape_cast %25 : vector<1x4x1xf32> to vector<4x1xf32>
    %cst_10 = arith.constant 0.000000e+00 : f32
    %27 = vector.broadcast %cst_10 : f32 to vector<4x256xf32>
    %28 = arith.select %22, %18, %27 : vector<4x256xi1>, vector<4x256xf32>
    %cst_11 = arith.constant dense<0.000000e+00> : vector<4xf32>
    %29 = vector.multi_reduction <add>, %28, %cst_11 [1] : vector<4x256xf32> to vector<4xf32>
    %30 = vector.shape_cast %29 : vector<4xf32> to vector<4x1xf32>
    %31 = arith.addf %26, %30 : vector<4x1xf32>
    %c0_12 = arith.constant 0 : index
    %c0_13 = arith.constant 0 : index
    %c0_14 = arith.constant 0 : index
    %32 = vector.load %arg5[%c0_12, %c0_13, %c0_14] : memref<1x4x1xf32, #tpu.memory_space<vmem>>, vector<1x4x1xf32>
    %33 = vector.shape_cast %32 : vector<1x4x1xf32> to vector<4x1xf32>
    %34 = vector.shape_cast %31 : vector<4x1xf32> to vector<1x4x1xf32>
    tpu.vector_store %arg5[%c0_12, %c0_13, %c0_14], %34 {strides = array<i32>} : memref<1x4x1xf32, #tpu.memory_space<vmem>>, vector<1x4x1xf32>,
    %c0_15 = arith.constant 0 : index
    %c0_16 = arith.constant 0 : index
    %c0_17 = arith.constant 0 : index
    %35 = vector.load %arg6[%c0_15, %c0_16, %c0_17] : memref<1x4x1xf32, #tpu.memory_space<vmem>>, vector<1x4x1xf32>
    %36 = vector.shape_cast %35 : vector<1x4x1xf32> to vector<4x1xf32>
    %cst_18 = arith.constant 1.000000e+00 : f32
    %cst_19 = arith.constant 0.000000e+00 : f32
    %37 = vector.broadcast %cst_18 : f32 to vector<4x256xf32>
    %38 = vector.broadcast %cst_19 : f32 to vector<4x256xf32>
    %39 = arith.select %22, %37, %38 : vector<4x256xi1>, vector<4x256xf32>
    %cst_20 = arith.constant dense<0.000000e+00> : vector<4xf32>
    %40 = vector.multi_reduction <add>, %39, %cst_20 [1] : vector<4x256xf32> to vector<4xf32>
    %41 = vector.shape_cast %40 : vector<4xf32> to vector<4x1xf32>
    %42 = arith.addf %36, %41 : vector<4x1xf32>
    %c0_21 = arith.constant 0 : index
    %c0_22 = arith.constant 0 : index
    %c0_23 = arith.constant 0 : index
    %43 = vector.load %arg6[%c0_21, %c0_22, %c0_23] : memref<1x4x1xf32, #tpu.memory_space<vmem>>, vector<1x4x1xf32>
    %44 = vector.shape_cast %43 : vector<1x4x1xf32> to vector<4x1xf32>
    %45 = vector.shape_cast %42 : vector<4x1xf32> to vector<1x4x1xf32>
    tpu.vector_store %arg6[%c0_21, %c0_22, %c0_23], %45 {strides = array<i32>} : memref<1x4x1xf32, #tpu.memory_space<vmem>>, vector<1x4x1xf32>,
    %c0_24 = arith.constant 0 : index
    %c0_25 = arith.constant 0 : index
    %c0_26 = arith.constant 0 : index
    %46 = vector.load %arg7[%c0_24, %c0_25, %c0_26] : memref<1x1x1xf32, #tpu.memory_space<vmem>>, vector<1x1x1xf32>
    %47 = vector.shape_cast %46 : vector<1x1x1xf32> to vector<1x1xf32>
    %cst_27 = arith.constant 1.000000e+00 : f32
    %cst_28 = arith.constant 0.000000e+00 : f32
    %48 = vector.broadcast %cst_27 : f32 to vector<1x256xf32>
    %49 = vector.broadcast %cst_28 : f32 to vector<1x256xf32>
    %50 = arith.select %24, %48, %49 : vector<1x256xi1>, vector<1x256xf32>
    %cst_29 = arith.constant dense<0.000000e+00> : vector<1xf32>
    %51 = vector.multi_reduction <add>, %50, %cst_29 [1] : vector<1x256xf32> to vector<1xf32>
    %52 = vector.shape_cast %51 : vector<1xf32> to vector<1x1xf32>
    %53 = arith.addf %47, %52 : vector<1x1xf32>
    %c0_30 = arith.constant 0 : index
    %c0_31 = arith.constant 0 : index
    %c0_32 = arith.constant 0 : index
    %54 = vector.load %arg7[%c0_30, %c0_31, %c0_32] : memref<1x1x1xf32, #tpu.memory_space<vmem>>, vector<1x1x1xf32>
    %55 = vector.shape_cast %54 : vector<1x1x1xf32> to vector<1x1xf32>
    %56 = vector.shape_cast %53 : vector<1x1xf32> to vector<1x1x1xf32>
    tpu.vector_store %arg7[%c0_30, %c0_31, %c0_32], %56 {strides = array<i32>} : memref<1x1x1xf32, #tpu.memory_space<vmem>>, vector<1x1x1xf32>,
    return
  }
  func.func @transform_0(%arg0: i32, %arg1: i32, %arg2: i32) -> (i32, i32, i32) {
    %c1_i32 = arith.constant 1 : i32
    %0 = arith.muli %arg1, %c1_i32 : i32
    %1 = arith.addi %0, %arg2 : i32
    %c0_i32 = arith.constant 0 : i32
    %c0_i32_0 = arith.constant 0 : i32
    return %arg0, %c0_i32, %1 : i32, i32, i32
  }
  func.func @transform_1(%arg0: i32, %arg1: i32, %arg2: i32) -> (i32, i32, i32) {
    %c1_i32 = arith.constant 1 : i32
    %0 = arith.muli %arg1, %c1_i32 : i32
    %1 = arith.addi %0, %arg2 : i32
    %c0_i32 = arith.constant 0 : i32
    %c0_i32_0 = arith.constant 0 : i32
    return %arg0, %c0_i32, %1 : i32, i32, i32
  }
  func.func @transform_2(%arg0: i32, %arg1: i32, %arg2: i32) -> (i32, i32, i32) {
    %c1_i32 = arith.constant 1 : i32
    %0 = arith.muli %arg0, %c1_i32 : i32
    %1 = arith.addi %0, %arg1 : i32
    %c0_i32 = arith.constant 0 : i32
    %c0_i32_0 = arith.constant 0 : i32
    %c0_i32_1 = arith.constant 0 : i32
    return %1, %c0_i32, %c0_i32_0 : i32, i32, i32
  }
  func.func @transform_3(%arg0: i32, %arg1: i32, %arg2: i32) -> (i32, i32, i32) {
    %c1_i32 = arith.constant 1 : i32
    %0 = arith.muli %arg0, %c1_i32 : i32
    %1 = arith.addi %0, %arg1 : i32
    %c0_i32 = arith.constant 0 : i32
    %c0_i32_0 = arith.constant 0 : i32
    %c0_i32_1 = arith.constant 0 : i32
    return %1, %c0_i32, %c0_i32_0 : i32, i32, i32
  }
  func.func @transform_4(%arg0: i32, %arg1: i32, %arg2: i32) -> (i32, i32, i32) {
    %c1_i32 = arith.constant 1 : i32
    %0 = arith.muli %arg0, %c1_i32 : i32
    %1 = arith.addi %0, %arg1 : i32
    %c0_i32 = arith.constant 0 : i32
    %c0_i32_0 = arith.constant 0 : i32
    %c0_i32_1 = arith.constant 0 : i32
    return %1, %c0_i32, %c0_i32_0 : i32, i32, i32
  }
}

</mosaic_0001>

<llo_original>
// kernel: tpu_custom_call.1
$region0: #{tpu_custom_call.1}
  #allocation0 [shape = 'u32[]', space=smem, size = 0x4, offset = 0x4, fixed_abs, tag = 'smem constant byte address 0x4 - core index']
  #allocation1 [shape = 'u32[144,128]{1,0:T(1,128)}', space=vmem, size = 0x12000, scoped, tag = 'internal scratch']
  %s0 = inlined_call_operand.hbm [shape: f32[2,4,256], index: 0, kind: input, shape index: {}]
  %s1 = inlined_call_operand.vmem [shape: u8[2,1,256], index: 1, kind: input, shape index: {}]
  %s2 = inlined_call_operand.vmem [shape: f32[2,4,1], index: 2, kind: output, shape index: {0}]
  %s3 = inlined_call_operand.vmem [shape: f32[2,4,1], index: 3, kind: output, shape index: {1}]
  %s4 = inlined_call_operand.vmem [shape: f32[2,1,1], index: 4, kind: output, shape index: {2}]
  %5 = xla_tuple %s2, %s3, %s4
  %s6 = sld [smem:[#allocation0]]
  $region65: #{tpu_custom_call.1} parent=0
    _
  %s8 = ssub.s32 1, %s6
  %s9 = scalar_select 0, %s8, %s6
  $region1: #{tpu_custom_call.1} parent=0
    #allocation2 [shape = 'u8[8192]{0}', space=vmem, size = 0x2000, scoped, tag = 'input window, operand 0']
    #allocation3 [shape = 's32[2]{0}', space=sflag, size = 0x8, scoped, tag = 'scoped memory for tpu_custom_call.1']
    %10 = vsyncpa [#allocation3], 0
    %s11 = scalar_lea.sflag [#allocation3], 1
    %12 = vsyncpa %s11, 0
    loop: start=0, step=1, limit=4
    $region2: #{tpu_custom_call.1} parent=1 // loop_pre_header
      _
    $region3: #{tpu_custom_call.1} parent=1 // loop_header
      %s14 = sphi 0, %s18
      %p15 = scmp.ge.s32.totalorder %s14, 4
      %s21 = sphi 0, %s40
      %s22 = sphi 0, %s36
      %s23 = sphi 0, %s32
      %s24 = sphi 0, %s21
      %s25 = sphi 0, %s22
      %s26 = sphi 0, %s23
      %s27 = sphi 0, %s24
      %s28 = sphi 0, %s25
      %s29 = sphi 0, %s26
      %s47 = sphi 0, %s49
      %s50 = sphi 0, %s47
      %s51 = sphi 0, %s50
      %s67 = sphi 0, %s51
      %s77 = sphi 0, %s79
      %s80 = sphi 0, %s77
      %s81 = sphi 0, %s80
      %s97 = sphi 0, %s81
      %s105 = sphi 0, %s107
      %s108 = sphi 0, %s105
      %s109 = sphi 0, %s108
      %s125 = sphi 0, %s109
      %s133 = sphi 0, %s135
      %s136 = sphi 0, %s133
      %s137 = sphi 0, %s136
      %s153 = sphi 0, %s137
      %s161 = sphi 0, %s163
      %s164 = sphi 0, %s161
      %s165 = sphi 0, %s164
      %s181 = sphi 0, %s165
    $region4: #{tpu_custom_call.1} parent=1 // loop_header_branch
      %17 = sbr.rel (%p15) target = $region8
    $region5: #{tpu_custom_call.1} parent=1 // loop_body
      %s19 = ssub.s32 %s14, 1
      %s20 = ssub.s32 %s14, 2
      %s30 = sadd.s32 1, %s23
      %p31 = scmp.ge.s32.totalorder %s30, 1
      %s32 = scalar_select %p31, 0, %s30
      %s33 = sadd.s32 1, %s22
      %s34 = scalar_select %p31, %s33, %s22
      %p35 = scmp.ge.s32.totalorder %s34, 1
      %s36 = scalar_select %p35, 0, %s34
      %s37 = sadd.s32 1, %s21
      %s38 = scalar_select %p35, %s37, %s21
      %p39 = scmp.ge.s32.totalorder %s38, 2
      %s40 = scalar_select %p39, 0, %s38
      %s41 = sadd.s32 %s22, %s23
      %s42 = sadd.s32 %s36, %s32
      %s43 = ssub.s32 %s21, %s40
      %s44 = ssub.s32 %s41, %s42
      %s45 = sor.u32 %s43, %s44
      %p46 = scmp.eq.s32.totalorder %s45, 0
      %s48 = sadd.s32 %s47, 1
      %s49 = scalar_select %p46, %s47, %s48
      %p52 = pneg %p46
      %p53 = scmp.eq.s32.totalorder %s14, 1
      %p54 = por %p52, %p53
      %p55 = scmp.ne.s32.totalorder %s47, %s50
      %p56 = scmp.eq.s32.totalorder %s14, 0
      %p57 = por %p55, %p56
      %p58 = scmp.ne.s32.totalorder %s47, %s50
      %p59 = scmp.eq.s32.totalorder %s19, 1
      %p60 = por %p58, %p59
      %p61 = scmp.ne.s32.totalorder %s50, %s51
      %p62 = scmp.eq.s32.totalorder %s19, 0
      %p63 = por %p61, %p62
      %p64 = scmp.ne.s32.totalorder %s50, %s51
      %p65 = scmp.eq.s32.totalorder %s20, 1
      %p66 = por %p64, %p65
      %p68 = scmp.ne.s32.totalorder %s51, %s67
      %p69 = scmp.eq.s32.totalorder %s20, 0
      %p70 = por %p68, %p69
      %s71 = sadd.s32 %s22, %s23
      %s72 = sadd.s32 %s36, %s32
      %s73 = ssub.s32 %s21, %s40
      %s74 = ssub.s32 %s71, %s72
      %s75 = sor.u32 %s73, %s74
      %p76 = scmp.eq.s32.totalorder %s75, 0
      %s78 = sadd.s32 %s77, 1
      %s79 = scalar_select %p76, %s77, %s78
      %p82 = pneg %p76
      %p83 = scmp.eq.s32.totalorder %s14, 1
      %p84 = por %p82, %p83
      %p85 = scmp.ne.s32.totalorder %s77, %s80
      %p86 = scmp.eq.s32.totalorder %s14, 0
      %p87 = por %p85, %p86
      %p88 = scmp.ne.s32.totalorder %s77, %s80
      %p89 = scmp.eq.s32.totalorder %s19, 1
      %p90 = por %p88, %p89
      %p91 = scmp.ne.s32.totalorder %s80, %s81
      %p92 = scmp.eq.s32.totalorder %s19, 0
      %p93 = por %p91, %p92
      %p94 = scmp.ne.s32.totalorder %s80, %s81
      %p95 = scmp.eq.s32.totalorder %s20, 1
      %p96 = por %p94, %p95
      %p98 = scmp.ne.s32.totalorder %s81, %s97
      %p99 = scmp.eq.s32.totalorder %s20, 0
      %p100 = por %p98, %p99
      %s101 = sadd.s32 %s21, %s22
      %s102 = sadd.s32 %s40, %s36
      %s103 = ssub.s32 %s101, %s102
      %p104 = scmp.eq.s32.totalorder %s103, 0
      %s106 = sadd.s32 %s105, 1
      %s107 = scalar_select %p104, %s105, %s106
      %p110 = pneg %p104
      %p111 = scmp.eq.s32.totalorder %s14, 1
      %p112 = por %p110, %p111
      %p113 = scmp.ne.s32.totalorder %s105, %s108
      %p114 = scmp.eq.s32.totalorder %s14, 0
      %p115 = por %p113, %p114
      %p116 = scmp.ne.s32.totalorder %s105, %s108
      %p117 = scmp.eq.s32.totalorder %s19, 1
      %p118 = por %p116, %p117
      %p119 = scmp.ne.s32.totalorder %s108, %s109
      %p120 = scmp.eq.s32.totalorder %s19, 0
      %p121 = por %p119, %p120
      %p122 = scmp.ne.s32.totalorder %s108, %s109
      %p123 = scmp.eq.s32.totalorder %s20, 1
      %p124 = por %p122, %p123
      %p126 = scmp.ne.s32.totalorder %s109, %s125
      %p127 = scmp.eq.s32.totalorder %s20, 0
      %p128 = por %p126, %p127
      %s129 = sadd.s32 %s21, %s22
      %s130 = sadd.s32 %s40, %s36
      %s131 = ssub.s32 %s129, %s130
      %p132 = scmp.eq.s32.totalorder %s131, 0
      %s134 = sadd.s32 %s133, 1
      %s135 = scalar_select %p132, %s133, %s134
      %p138 = pneg %p132
      %p139 = scmp.eq.s32.totalorder %s14, 1
      %p140 = por %p138, %p139
      %p141 = scmp.ne.s32.totalorder %s133, %s136
      %p142 = scmp.eq.s32.totalorder %s14, 0
      %p143 = por %p141, %p142
      %p144 = scmp.ne.s32.totalorder %s133, %s136
      %p145 = scmp.eq.s32.totalorder %s19, 1
      %p146 = por %p144, %p145
      %p147 = scmp.ne.s32.totalorder %s136, %s137
      %p148 = scmp.eq.s32.totalorder %s19, 0
      %p149 = por %p147, %p148
      %p150 = scmp.ne.s32.totalorder %s136, %s137
      %p151 = scmp.eq.s32.totalorder %s20, 1
      %p152 = por %p150, %p151
      %p154 = scmp.ne.s32.totalorder %s137, %s153
      %p155 = scmp.eq.s32.totalorder %s20, 0
      %p156 = por %p154, %p155
      %s157 = sadd.s32 %s21, %s22
      %s158 = sadd.s32 %s40, %s36
      %s159 = ssub.s32 %s157, %s158
      %p160 = scmp.eq.s32.totalorder %s159, 0
      %s162 = sadd.s32 %s161, 1
      %s163 = scalar_select %p160, %s161, %s162
      %p166 = pneg %p160
      %p167 = scmp.eq.s32.totalorder %s14, 1
      %p168 = por %p166, %p167
      %p169 = scmp.ne.s32.totalorder %s161, %s164
      %p170 = scmp.eq.s32.totalorder %s14, 0
      %p171 = por %p169, %p170
      %p172 = scmp.ne.s32.totalorder %s161, %s164
      %p173 = scmp.eq.s32.totalorder %s19, 1
      %p174 = por %p172, %p173
      %p175 = scmp.ne.s32.totalorder %s164, %s165
      %p176 = scmp.eq.s32.totalorder %s19, 0
      %p177 = por %p175, %p176
      %p178 = scmp.ne.s32.totalorder %s164, %s165
      %p179 = scmp.eq.s32.totalorder %s20, 1
      %p180 = por %p178, %p179
      %p182 = scmp.ne.s32.totalorder %s165, %s181
      %p183 = scmp.eq.s32.totalorder %s20, 0
      %p184 = por %p182, %p183
      %p185 = scmp.le.s32.totalorder 1, %s14
      %p186 = scmp.lt.s32.totalorder %s14, 3
      %p187 = pnand %p185, %p186
      %p188 = pneg %p187
      // Predicated region
      $region9: #{tpu_custom_call.1} parent=5 // pred_check
        _
      $region10: #{tpu_custom_call.1} parent=5 // pred_check_branch
        %190 = sbr.rel (%p187) target = $region12
      $region11: #{tpu_custom_call.1} parent=5 // pred_region
        %s191 = ssub.s32 %s14, 1
      $region12: #{tpu_custom_call.1} parent=5 // pred_fallthru
        _
      %p192 = scmp.lt.s32.totalorder %s14, 2
      // Predicated region
      $region13: #{tpu_custom_call.1} parent=5 // pred_check
        %p193 = pneg %p192
      $region14: #{tpu_custom_call.1} parent=5 // pred_check_branch
        %195 = sbr.rel (%p193) target = $region16
      $region15: #{tpu_custom_call.1} parent=5 // pred_region
        // Predicated region
        $region17: #{tpu_custom_call.1} parent=15 // pred_check
          %p196 = pneg %p57
        $region18: #{tpu_custom_call.1} parent=15 // pred_check_branch
          %198 = sbr.rel (%p196) target = $region20
        $region19: #{tpu_custom_call.1} parent=15 // pred_region
          %s199 = sand.u32 %s47, 1
          %s200 = scalar_lea.sflag [#allocation3], %s199
          %s201 = sand.u32 %s47, 1
          %s202 = smul.addr %s201, 8
          %s203 = scalar_lea.vmem [#allocation2], %s202
          %s204 = sadd.s32 %s22, %s23
          %s205 = smul.u32 2, %s204
          %s207 = ssub.s32 128, 128
          %208 = vsyncadd %s200, %s207
          %s209 = smul.addr %s21, 2
          %s210 = sadd.s32 %s205, %s209
          %s211 = smul.addr %s210, 64
          %s212 = scalar_lea.hbm %s0, %s211
          %s214 = sshll.u32 %s203, 4
          %s215 = int_to_ptr.vmem [resolvable:$true] %s214
          %217 = dma.hbm_to_vmem [thread:$0]  %s212, 128, %s215, %s200
        $region20: #{tpu_custom_call.1} parent=15 // pred_fallthru
          _
        // Predicated region
        $region21: #{tpu_custom_call.1} parent=15 // pred_check
          %p218 = pneg %p87
        $region22: #{tpu_custom_call.1} parent=15 // pred_check_branch
          %220 = sbr.rel (%p218) target = $region24
        $region23: #{tpu_custom_call.1} parent=15 // pred_region
          %s221 = sadd.s32 %s22, %s23
          %s222 = smul.u32 2, %s221
          %p223 = scmp.lt.s32.totalorder %s21, 1
          %s224 = scalar_select %p223, %s21, 1
          %p225 = scmp.lt.s32.totalorder %s222, 1
          %s226 = scalar_select %p225, %s222, 1
          %s227 = smul.addr %s224, 2
          %s228 = sadd.s32 %s226, %s227
          %s229 = scalar_lea.vmem %s1, %s228
          %s230 = sadd.s32 %s22, %s23
          %s231 = smul.u32 2, %s230
        $region24: #{tpu_custom_call.1} parent=15 // pred_fallthru
          _
      $region16: #{tpu_custom_call.1} parent=5 // pred_fallthru
        _
      %p232 = scmp.le.s32.totalorder 1, %s14
      %p233 = scmp.lt.s32.totalorder %s14, 3
      %p234 = pnand %p232, %p233
      %p235 = pneg %p234
      // Predicated region
      $region25: #{tpu_custom_call.1} parent=5 // pred_check
        _
      $region26: #{tpu_custom_call.1} parent=5 // pred_check_branch
        %237 = sbr.rel (%p234) target = $region28
      $region27: #{tpu_custom_call.1} parent=5 // pred_region
        %s238 = ssub.s32 %s14, 1
        %s239 = sand.u32 %s50, 1
        %s240 = scalar_lea.sflag [#allocation3], %s239
        %s241 = sand.u32 %s50, 1
        %s242 = smul.addr %s241, 8
        %s243 = scalar_lea.vmem [#allocation2], %s242
        // Predicated region
        $region29: #{tpu_custom_call.1} parent=27 // pred_check
          %p244 = pneg %p63
        $region30: #{tpu_custom_call.1} parent=27 // pred_check_branch
          %246 = sbr.rel (%p244) target = $region32
        $region31: #{tpu_custom_call.1} parent=27 // pred_region
          %247 = dma.done %s240, 128
        $region32: #{tpu_custom_call.1} parent=27 // pred_fallthru
          _
        %s248 = sand.u32 %s50, 1
        %s249 = scalar_lea.sflag [#allocation3], %s248
        %s250 = sand.u32 %s50, 1
        %s251 = smul.addr %s250, 8
        %s252 = scalar_lea.vmem [#allocation2], %s251
        %p253 = pneg %p63
        %p254 = pneg %p60
        %s255 = sadd.s32 %s25, %s26
        %s256 = smul.u32 2, %s255
        %p257 = scmp.lt.s32.totalorder %s24, 1
        %s258 = scalar_select %p257, %s24, 1
        %p259 = scmp.lt.s32.totalorder %s256, 1
        %s260 = scalar_select %p259, %s256, 1
        %s261 = smul.addr %s258, 2
        %s262 = sadd.s32 %s260, %s261
        %s263 = scalar_lea.vmem %s1, %s262
        %p264 = pneg %p93
        %p265 = pneg %p90
        %p266 = pneg %p121
        %p267 = pneg %p118
        %s268 = sadd.s32 %s24, %s25
        %p269 = scmp.lt.s32.totalorder %s268, 1
        %s270 = scalar_select %p269, %s268, 1
        %s271 = smul.addr %s270, 4
        %s272 = scalar_lea.vmem %s2, %s271
        %p273 = pneg %p149
        %p274 = pneg %p146
        %s275 = sadd.s32 %s24, %s25
        %p276 = scmp.lt.s32.totalorder %s275, 1
        %s277 = scalar_select %p276, %s275, 1
        %s278 = smul.addr %s277, 4
        %s279 = scalar_lea.vmem %s3, %s278
        %p280 = pneg %p177
        %p281 = pneg %p174
        %s282 = sadd.s32 %s24, %s25
        %p283 = scmp.lt.s32.totalorder %s282, 1
        %s284 = scalar_select %p283, %s282, 1
        %s285 = scalar_lea.vmem %s4, %s284
        %s286 = sadd.s32 %s25, %s26
        %s287 = smul.u32 2, %s286
        %s288 = sadd.s32 %s25, %s26
        %s289 = smul.u32 2, %s288
        %p290 = scmp.lt.s32.totalorder %s24, 1
        %s291 = scalar_select %p290, %s24, 1
        %p292 = scmp.lt.s32.totalorder %s289, 1
        %s293 = scalar_select %p292, %s289, 1
        %s294 = smul.addr %s291, 2
        %s295 = sadd.s32 %s293, %s294
        %s296 = scalar_lea.vmem %s1, %s295
        %s297 = sadd.s32 %s25, %s26
        %s298 = smul.u32 2, %s297
        %s299 = sadd.s32 %s24, %s25
        %p300 = scmp.lt.s32.totalorder %s299, 1
        %s301 = scalar_select %p300, %s299, 1
        %s302 = smul.addr %s301, 4
        %s303 = scalar_lea.vmem %s2, %s302
        %s304 = sadd.s32 %s24, %s25
        %s305 = sadd.s32 %s24, %s25
        %p306 = scmp.lt.s32.totalorder %s305, 1
        %s307 = scalar_select %p306, %s305, 1
        %s308 = smul.addr %s307, 4
        %s309 = scalar_lea.vmem %s3, %s308
        %s310 = sadd.s32 %s24, %s25
        %s311 = sadd.s32 %s24, %s25
        %p312 = scmp.lt.s32.totalorder %s311, 1
        %s313 = scalar_select %p312, %s311, 1
        %s314 = scalar_lea.vmem %s4, %s313
        %s315 = sadd.s32 %s24, %s25
        %p316 = scmp.eq.s32.totalorder %s26, 0
        // Predicated region
        $region33: #{tpu_custom_call.1} parent=27 // pred_check
          %p317 = pneg %p316
        $region34: #{tpu_custom_call.1} parent=27 // pred_check_branch
          %319 = sbr.rel (%p317) target = $region36
        $region35: #{tpu_custom_call.1} parent=27 // pred_region
          %vm320 = vcmask 3072
          %321 = vst.msk [vmem:[%s303] sm:$0xf] %vm320, 0.0
          %322 = vst.msk [vmem:[%s309] sm:$0xf] %vm320, 0.0
          %vm323 = vcmask 0
          %324 = vst.msk [vmem:[%s314] sm:$0x1] %vm323, 0.0
        $region36: #{tpu_custom_call.1} parent=27 // pred_fallthru
          _
        %v325 = vld [vmem:[%s243] sm:$0xff]
        %v326 = vld [vmem:[%s296] sm:$0x3]
        %v327 = vunpack.c.0.s8 %v326
        %v328 = vand.u32 %v327, 255
        %v330 = vcombine.high %v325, %v325
        %vm332 = vcmask 1043456
        %v333 = vsel %vm332, %v325, -inf
        %v334 = vrot.slane %v333, 4
        %v335 = vmax.f32 %v333, %v334
        %v336 = vrot.slane %v335, 2
        %v337 = vmax.f32 %v335, %v336
        %v338 = vrot.slane %v337, 1
        %v339 = vmax.f32 %v337, %v338
        %v340 = vsel %vm332, %v330, -inf
        %v341 = vrot.slane %v340, 4
        %v342 = vmax.f32 %v340, %v341
        %v343 = vrot.slane %v342, 2
        %v344 = vmax.f32 %v342, %v343
        %v345 = vrot.slane %v344, 1
        %v346 = vmax.f32 %v344, %v345
        %v349 = vcombine.low %v339, %v346
        %v351 = vsub.f32 %v325, %v349
        %v352 = vmul.f32 %v351, 1.442695
        %v353 = vpow.pop %v352
        %v355 = vcombine.high %v353, %v353
        %v357 = vsel %vm332, %v353, 0.0
        %v358 = vrot.slane %v357, 4
        %v359 = vadd.f32 %v357, %v358
        %v360 = vrot.slane %v359, 2
        %v361 = vadd.f32 %v359, %v360
        %v362 = vrot.slane %v361, 1
        %v363 = vadd.f32 %v361, %v362
        %v364 = vsel %vm332, %v355, 0.0
        %v365 = vrot.slane %v364, 4
        %v366 = vadd.f32 %v364, %v365
        %v367 = vrot.slane %v366, 2
        %v368 = vadd.f32 %v366, %v367
        %v369 = vrot.slane %v368, 1
        %v370 = vadd.f32 %v368, %v369
        %v371 = vlog2.pop %v363
        %v372 = vmul.f32 %v371, 0.6931472
        %v373 = vlog2.pop %v370
        %v374 = vmul.f32 %v373, 0.6931472
        %v375 = vadd.f32 %v339, %v372
        %v376 = vadd.f32 %v346, %v374
        %v377 = vsub.f32 %v375, %v325
        %v378 = vsub.f32 %v376, %v330
        %v379 = vlaneseq
        %v380 = vshrl.u32 %v379, 7
        %v381 = vlaneseq
        %v382 = vshrl.u32 %v381, 7
        %v383 = vsub.s32 0, %v382
        %v384 = vrot.slane %v328, %v383
        %v385 = vlaneseq
        %v386 = vshrl.u32 %v385, 7
        %v387 = vsub.s32 4, %v386
        %v388 = vrot.slane %v328, %v387
        %v389 = vlaneseq
        %v390 = vshrl.u32 %v389, 7
        %v391 = vsub.s32 0, %v390
        %v392 = vrot.slane %v384, %v391
        %v393 = vlaneseq
        %v394 = vshrl.u32 %v393, 7
        %v395 = vsub.s32 0, %v394
        %v396 = vrot.slane %v388, %v395
        %vm397 = vcmp.eq.s32.totalorder %v392, %v380
        %vm398 = vcmp.eq.s32.totalorder %v396, %v380
        %vm399 = vcmp.eq.s32.totalorder %v328, 4
        %v400 = vld [vmem:[%s303] sm:$0xf]
        %v401 = vsel %vm397, %v377, 0.0
        %v402 = vsel %vm398, %v378, 0.0
        %v403 = vsel %vm332, %v401, 0.0
        %v404 = vsel %vm332, %v402, 0.0
        %v405 = vadd.f32 %v403, %v404
        %406 = vadd.xlane.f32.xlu0 %v405
        %v407 = vpop.xlane.xlu0 %406
        %v408 = vadd.f32 %v400, %v407
        %vm409 = vcmask 3072
        %410 = vst.msk [vmem:[%s303] sm:$0xf] %vm409, %v408
        %v411 = vld [vmem:[%s309] sm:$0xf]
        %v412 = vsel %vm397, 1.0, 0.0
        %v413 = vsel %vm398, 1.0, 0.0
        %v414 = vsel %vm332, %v412, 0.0
        %v415 = vsel %vm332, %v413, 0.0
        %v416 = vadd.f32 %v414, %v415
        %417 = vadd.xlane.f32.xlu0 %v416
        %v418 = vpop.xlane.xlu0 %417
        %v419 = vadd.f32 %v411, %v418
        %420 = vst.msk [vmem:[%s309] sm:$0xf] %vm409, %v419
        %v421 = vld [vmem:[%s314] sm:$0x1]
        %v422 = vsel %vm399, 1.0, 0.0
        %v424 = vlaneseq
        %v425 = vshrl.u32 %v424, 7
        %v426 = vsub.s32 0, %v425
        %v427 = vrot.slane %v422, %v426
        %v428 = vlaneseq
        %v429 = vshrl.u32 %v428, 7
        %v430 = vsub.s32 4, %v429
        %v431 = vrot.slane %v422, %v430
        %vm434 = vcmask 1040384
        %v435 = vsel %vm434, %v427, 0.0
        %v436 = vsel %vm434, %v431, 0.0
        %v437 = vadd.f32 %v435, %v436
        %438 = vadd.xlane.f32.xlu0 %v437
        %v439 = vpop.xlane.xlu0 %438
        %v440 = vadd.f32 %v421, %v439
        %vm441 = vcmask 0
        %442 = vst.msk [vmem:[%s314] sm:$0x1] %vm441, %v440
        %s443 = sadd.s32 %s24, %s25
        %p444 = scmp.lt.s32.totalorder %s443, 1
        %s445 = scalar_select %p444, %s443, 1
        %s446 = smul.addr %s445, 4
        %s447 = scalar_lea.vmem %s2, %s446
        %s448 = sadd.s32 %s24, %s25
        %p449 = scmp.lt.s32.totalorder %s448, 1
        %s450 = scalar_select %p449, %s448, 1
        %s451 = smul.addr %s450, 4
        %s452 = scalar_lea.vmem %s3, %s451
        %s453 = sadd.s32 %s24, %s25
        %p454 = scmp.lt.s32.totalorder %s453, 1
        %s455 = scalar_select %p454, %s453, 1
        %s456 = scalar_lea.vmem %s4, %s455
        // Predicated region
        $region37: #{tpu_custom_call.1} parent=27 // pred_check
          %p457 = pneg %p118
        $region38: #{tpu_custom_call.1} parent=27 // pred_check_branch
          %459 = sbr.rel (%p457) target = $region40
        $region39: #{tpu_custom_call.1} parent=27 // pred_region
          %s460 = sadd.s32 %s24, %s25
        $region40: #{tpu_custom_call.1} parent=27 // pred_fallthru
          _
        // Predicated region
        $region41: #{tpu_custom_call.1} parent=27 // pred_check
          %p461 = pneg %p146
        $region42: #{tpu_custom_call.1} parent=27 // pred_check_branch
          %463 = sbr.rel (%p461) target = $region44
        $region43: #{tpu_custom_call.1} parent=27 // pred_region
          %s464 = sadd.s32 %s24, %s25
        $region44: #{tpu_custom_call.1} parent=27 // pred_fallthru
          _
        // Predicated region
        $region45: #{tpu_custom_call.1} parent=27 // pred_check
          %p465 = pneg %p174
        $region46: #{tpu_custom_call.1} parent=27 // pred_check_branch
          %467 = sbr.rel (%p465) target = $region48
        $region47: #{tpu_custom_call.1} parent=27 // pred_region
          %s468 = sadd.s32 %s24, %s25
        $region48: #{tpu_custom_call.1} parent=27 // pred_fallthru
          _
      $region28: #{tpu_custom_call.1} parent=5 // pred_fallthru
        _
      %p469 = scmp.le.s32.totalorder 2, %s14
      // Predicated region
      $region49: #{tpu_custom_call.1} parent=5 // pred_check
        %p470 = pneg %p469
      $region50: #{tpu_custom_call.1} parent=5 // pred_check_branch
        %472 = sbr.rel (%p470) target = $region52
      $region51: #{tpu_custom_call.1} parent=5 // pred_region
        %s473 = ssub.s32 %s14, 2
        // Predicated region
        $region53: #{tpu_custom_call.1} parent=51 // pred_check
          %p474 = pneg %p124
        $region54: #{tpu_custom_call.1} parent=51 // pred_check_branch
          %476 = sbr.rel (%p474) target = $region56
        $region55: #{tpu_custom_call.1} parent=51 // pred_region
          %s477 = sadd.s32 %s27, %s28
          %p478 = scmp.lt.s32.totalorder %s477, 1
          %s479 = scalar_select %p478, %s477, 1
          %s480 = smul.addr %s479, 4
          %s481 = scalar_lea.vmem %s2, %s480
        $region56: #{tpu_custom_call.1} parent=51 // pred_fallthru
          _
        // Predicated region
        $region57: #{tpu_custom_call.1} parent=51 // pred_check
          %p482 = pneg %p152
        $region58: #{tpu_custom_call.1} parent=51 // pred_check_branch
          %484 = sbr.rel (%p482) target = $region60
        $region59: #{tpu_custom_call.1} parent=51 // pred_region
          %s485 = sadd.s32 %s27, %s28
          %p486 = scmp.lt.s32.totalorder %s485, 1
          %s487 = scalar_select %p486, %s485, 1
          %s488 = smul.addr %s487, 4
          %s489 = scalar_lea.vmem %s3, %s488
        $region60: #{tpu_custom_call.1} parent=51 // pred_fallthru
          _
        // Predicated region
        $region61: #{tpu_custom_call.1} parent=51 // pred_check
          %p490 = pneg %p180
        $region62: #{tpu_custom_call.1} parent=51 // pred_check_branch
          %492 = sbr.rel (%p490) target = $region64
        $region63: #{tpu_custom_call.1} parent=51 // pred_region
          %s493 = sadd.s32 %s27, %s28
          %p494 = scmp.lt.s32.totalorder %s493, 1
          %s495 = scalar_select %p494, %s493, 1
          %s496 = scalar_lea.vmem %s4, %s495
        $region64: #{tpu_custom_call.1} parent=51 // pred_fallthru
          _
      $region52: #{tpu_custom_call.1} parent=5 // pred_fallthru
        _
    $region6: #{tpu_custom_call.1} parent=1 // loop_footer
      %s18 = sadd.s32 1, %s14
    $region7: #{tpu_custom_call.1} parent=1 // loop_footer_branch
      %13 = sbr.rel target = $region3
    $region8: #{tpu_custom_call.1} parent=1 // loop_exit
      _
    %497 = vsyncpa [#allocation3], 1
    %s498 = scalar_lea.sflag [#allocation3], 1
    %499 = vsyncpa %s498, 1

</llo_original>
